<compile_context>
chip_gen: v7x
topology: tpu7x:2x2x1
jax: 0.10.0
libtpu: 0.0.40
codegen_flags: <defaults>
</compile_context>

<pallas_src>
import functools
import math

import jax
import jax.numpy as jnp
from jax.experimental import pallas as pl
from jax.experimental.pallas import tpu as pltpu


# ----------------------------------------------------------------------------
# configuration helpers
# ----------------------------------------------------------------------------
def _vmem_limit_bytes():
    try:
        cap = getattr(pltpu.get_tpu_info(), "vmem_capacity_bytes", None)
    except Exception:
        cap = None
    if cap is None:
        cap = 64 * 1024 * 1024
    if cap >= 100 * 1024 * 1024:          # v5e / v6e: 128 MiB physical VMEM
        return 96 * 1024 * 1024
    return 30 * 1024 * 1024               # v7x: 64 MiB per TensorCore


_VMEM_LIMIT = _vmem_limit_bytes()
_WEIGHT_RESIDENT_BYTES = 16 * 1024 * 1024   # keep W fully resident below this
_MATMUL_DTYPE = jnp.bfloat16                # MXU-native dtype on v6e/v7x


def _pick_tile(dim, target):
    """Largest lane/sublane-friendly tile <= target that divides dim."""
    if dim <= target:
        return dim
    t = (target // 128) * 128
    while t >= 128:
        if dim % t == 0:
            return t
        t -= 128
    return dim  # fallback: single full block


def _erf_approx(x):
    # Abramowitz & Stegun 7.1.26, max abs error ~1.5e-7 (VPU/EUP ops only).
    a1, a2, a3, a4, a5 = 0.254829592, -0.284496736, 1.421413741, -1.453152027, 1.061405429
    p = 0.3275911
    ax = jnp.abs(x)
    t = 1.0 / (1.0 + p * ax)
    poly = ((((a5 * t + a4) * t + a3) * t + a2) * t + a1) * t
    y = 1.0 - poly * jnp.exp(-ax * ax)
    return jnp.where(x < 0, -y, y)


def _ln_body(x, g, b, eps):
    u = jnp.mean(x, axis=-1, keepdims=True)
    d = x - u
    s = jnp.mean(d * d, axis=-1, keepdims=True)
    return g * (d / jnp.sqrt(s + eps)) + b


# ----------------------------------------------------------------------------
# Kernel 1: fused linear (+ optional GELU / tanh epilogue), weight-resident
# ----------------------------------------------------------------------------
def _linear_kernel(x_ref, w_ref, b_ref, o_ref, *, act):
    y = jnp.dot(x_ref[...], w_ref[...], preferred_element_type=jnp.float32)
    y = y + b_ref[...]
    if act == "gelu":                    # BERT erf-GELU
        y = 0.5 * y * (1.0 + _erf_approx(y * 0.7071067811865476))
    elif act == "tanh":
        y = jnp.tanh(y)
    o_ref[...] = y.astype(o_ref.dtype)


def linear(x, w, b, act="none", *, out_dtype=None, tm=512, tn=1024):
    """x: [M, K] (bf16); w: [K, N] bf16 (pre-transposed from torch [out,in]); b: [N] f32."""
    M, K = x.shape
    K2, N = w.shape
    assert K == K2
    out_dtype = out_dtype or x.dtype
    tm = _pick_tile(M, tm)
    b2 = b.reshape(1, N).astype(jnp.float32)
    kernel = functools.partial(_linear_kernel, act=act)
    xs, ws, os_ = x.dtype.itemsize, w.dtype.itemsize, jnp.dtype(out_dtype).itemsize

    if K * N * ws <= _WEIGHT_RESIDENT_BYTES:
        # Weight fully resident; grid only over M -> W DMA'd exactly once.
        grid = (M // tm,)
        in_specs = [pl.BlockSpec((tm, K), lambda i: (i, 0)),
                    pl.BlockSpec((K, N), lambda i: (0, 0)),
                    pl.BlockSpec((1, N), lambda i: (0, 0))]
        out_specs = pl.BlockSpec((tm, N), lambda i: (i, 0))
        semantics = ("parallel",)
        bytes_accessed = xs * M * K + ws * K * N + 4 * N + os_ * M * N
    else:
        # Large weight: tile N, keep each weight N-tile resident across M.
        tn = _pick_tile(N, tn)
        grid = (N // tn, M // tm)
        in_specs = [pl.BlockSpec((tm, K), lambda j, i: (i, 0)),
                    pl.BlockSpec((K, tn), lambda j, i: (0, j)),
                    pl.BlockSpec((1, tn), lambda j, i: (0, j))]
        out_specs = pl.BlockSpec((tm, tn), lambda j, i: (i, j))
        semantics = ("parallel", "parallel")
        bytes_accessed = xs * M * K * (N // tn) + ws * K * N + 4 * N + os_ * M * N

    return pl.pallas_call(
        kernel,
        out_shape=jax.ShapeDtypeStruct((M, N), out_dtype),
        grid_spec=pltpu.PrefetchScalarGridSpec(
            num_scalar_prefetch=0, grid=grid,
            in_specs=in_specs, out_specs=out_specs),
        compiler_params=pltpu.CompilerParams(
            dimension_semantics=semantics,
            vmem_limit_bytes=_VMEM_LIMIT),
        cost_estimate=pl.CostEstimate(
            flops=2 * M * N * K,
            transcendentals=(M * N if act in ("gelu", "tanh") else 0),
            bytes_accessed=int(bytes_accessed)),
    )(x, w, b2)


# ----------------------------------------------------------------------------
# Kernel 2: fused linear + residual-add + BertLayerNorm (attn-out / FFN-out)
# ----------------------------------------------------------------------------
def _linear_res_ln_kernel(x_ref, w_ref, b_ref, r_ref, g_ref, bb_ref, o_ref, *, eps):
    y = jnp.dot(x_ref[...], w_ref[...], preferred_element_type=jnp.float32)
    y = y + b_ref[...] + r_ref[...].astype(jnp.float32)
    o_ref[...] = _ln_body(y, g_ref[...], bb_ref[...], eps).astype(o_ref.dtype)


def linear_res_ln(x, w, b, residual, gamma, beta, *, eps=1e-12, out_dtype=None, tm=512):
    """LayerNorm(x @ w + b + residual).  x: [M,K]; w: [K,N]; residual: [M,N]."""
    M, K = x.shape
    K2, N = w.shape
    assert K == K2 and residual.shape == (M, N)
    out_dtype = out_dtype or x.dtype
    tm = _pick_tile(M, tm)
    b2 = b.reshape(1, N).astype(jnp.float32)
    g2 = gamma.reshape(1, N).astype(jnp.float32)
    bb2 = beta.reshape(1, N).astype(jnp.float32)
    xs, ws, rs, os_ = (x.dtype.itemsize, w.dtype.itemsize,
                       residual.dtype.itemsize, jnp.dtype(out_dtype).itemsize)
    return pl.pallas_call(
        functools.partial(_linear_res_ln_kernel, eps=eps),
        out_shape=jax.ShapeDtypeStruct((M, N), out_dtype),
        grid_spec=pltpu.PrefetchScalarGridSpec(
            num_scalar_prefetch=0, grid=(M // tm,),
            in_specs=[pl.BlockSpec((tm, K), lambda i: (i, 0)),
                      pl.BlockSpec((K, N), lambda i: (0, 0)),
                      pl.BlockSpec((1, N), lambda i: (0, 0)),
                      pl.BlockSpec((tm, N), lambda i: (i, 0)),
                      pl.BlockSpec((1, N), lambda i: (0, 0)),
                      pl.BlockSpec((1, N), lambda i: (0, 0))],
            out_specs=pl.BlockSpec((tm, N), lambda i: (i, 0))),
        compiler_params=pltpu.CompilerParams(
            dimension_semantics=("parallel",),
            vmem_limit_bytes=_VMEM_LIMIT),
        cost_estimate=pl.CostEstimate(
            flops=2 * M * N * K,
            transcendentals=M,
            bytes_accessed=int(xs * M * K + ws * K * N + rs * M * N + 12 * N + os_ * M * N)),
    )(x, w, b2, residual, g2, bb2)


# ----------------------------------------------------------------------------
# Kernel 3: fused embedding-sum + BertLayerNorm
# ----------------------------------------------------------------------------
def _emb_ln_kernel(we_ref, pb_ref, g_ref, b_ref, o_ref, *, eps):
    x = we_ref[...].astype(jnp.float32) + pb_ref[...].astype(jnp.float32)
    o_ref[...] = _ln_body(x, g_ref[...], b_ref[...], eps).astype(o_ref.dtype)


def embed_layer_norm(we, posbias, gamma, beta, *, eps=1e-12, out_dtype=_MATMUL_DTYPE):
    """we: [B,S,H] word embeddings; posbias: [S,H] = pos_emb[:S] + tok_type_emb[0]."""
    B, S, H = we.shape
    g2 = gamma.reshape(1, H).astype(jnp.float32)
    b2 = beta.reshape(1, H).astype(jnp.float32)
    return pl.pallas_call(
        functools.partial(_emb_ln_kernel, eps=eps),
        out_shape=jax.ShapeDtypeStruct((B, S, H), out_dtype),
        grid_spec=pltpu.PrefetchScalarGridSpec(
            num_scalar_prefetch=0, grid=(B,),
            in_specs=[pl.BlockSpec((None, S, H), lambda b: (b, 0, 0)),
                      pl.BlockSpec((S, H), lambda b: (0, 0)),
                      pl.BlockSpec((1, H), lambda b: (0, 0)),
                      pl.BlockSpec((1, H), lambda b: (0, 0))],
            out_specs=pl.BlockSpec((None, S, H), lambda b: (b, 0, 0))),
        compiler_params=pltpu.CompilerParams(
            dimension_semantics=("parallel",),
            vmem_limit_bytes=_VMEM_LIMIT),
    )(we, posbias, g2, b2)


# ----------------------------------------------------------------------------
# Kernel 4: multi-head self-attention, per-(batch, query-tile), lane-dense output
# ----------------------------------------------------------------------------
def _mha_kernel(q_ref, k_ref, v_ref, m_ref, o_ref, *, scale, num_heads, causal, tq):
    S, H = k_ref.shape
    d = H // num_heads
    kvalid = m_ref[...]                            # (1, S) key-validity (1.0 / 0.0)
    bias = jnp.broadcast_to((1.0 - kvalid) * -10000.0, (tq, S))
    if causal:
        q0 = pl.program_id(1) * tq
        row = jax.lax.broadcasted_iota(jnp.int32, (tq, S), 0) + q0
        col = jax.lax.broadcasted_iota(jnp.int32, (tq, S), 1)
        bias = jnp.where(row >= col, bias, -10000.0)
    for h in range(num_heads):                     # static unrolled head loop
        sl = slice(h * d, (h + 1) * d)
        qh, kh, vh = q_ref[:, sl], k_ref[:, sl], v_ref[:, sl]
        # q @ k^T via contracting-dim dot_general -> MXU consumes k directly.
        s = jax.lax.dot_general(qh, kh, (((1,), (1,)), ((), ())),
                                preferred_element_type=jnp.float32)
        s = s * scale + bias
        s = s - jnp.max(s, axis=-1, keepdims=True)
        p = jnp.exp(s)
        p = p * pl.reciprocal(jnp.sum(p, axis=-1, keepdims=True), approx=True)
        o = jnp.dot(p.astype(vh.dtype), vh, preferred_element_type=jnp.float32)
        o_ref[:, sl] = o.astype(o_ref.dtype)


def mha(q, k, v, key_mask, *, num_heads, causal=False, tq=256):
    """q/k/v: [B, S, H] (heads packed along H); key_mask: [B, 1, S] float 1/0."""
    B, S, H = q.shape
    d = H // num_heads
    tq = _pick_tile(S, tq)
    scale = 1.0 / math.sqrt(d)
    itemsize = q.dtype.itemsize
    qo_spec = pl.BlockSpec((None, tq, H), lambda b, qi: (b, qi, 0))
    kv_spec = pl.BlockSpec((None, S, H), lambda b, qi: (b, 0, 0))
    m_spec = pl.BlockSpec((None, 1, S), lambda b, qi: (b, 0, 0))
    return pl.pallas_call(
        functools.partial(_mha_kernel, scale=scale, num_heads=num_heads,
                          causal=causal, tq=tq),
        out_shape=jax.ShapeDtypeStruct((B, S, H), q.dtype),
        grid_spec=pltpu.PrefetchScalarGridSpec(
            num_scalar_prefetch=0, grid=(B, S // tq),
            in_specs=[qo_spec, kv_spec, kv_spec, m_spec],
            out_specs=qo_spec),
        compiler_params=pltpu.CompilerParams(
            dimension_semantics=("parallel", "parallel"),
            vmem_limit_bytes=_VMEM_LIMIT),
        cost_estimate=pl.CostEstimate(
            flops=4 * B * num_heads * S * S * d,
            transcendentals=B * num_heads * S * S,
            bytes_accessed=int(itemsize * 4 * B * S * H + 4 * B * S)),
    )(q, k, v, key_mask)


# ----------------------------------------------------------------------------
# BertModel forward (default path: no prompt / cache / cross-attention)
# ----------------------------------------------------------------------------
def bert_embeddings(tokens, params):
    B, S = tokens.shape
    # Embedding gather left to XLA (data-dependent); sum + LN fused in kernel.
    we = jnp.take(params["word_emb"], tokens, axis=0)                     # [B,S,H] f32
    posbias = params["pos_emb"][:S] + params["tok_type_emb"][0][None, :]  # [S,H] f32
    return embed_layer_norm(we, posbias, params["emb_ln_g"], params["emb_ln_b"])


def bert_layer(x, lp, key_mask, num_heads, causal):
    B, S, H = x.shape
    x2 = x.reshape(B * S, H)                                              # bf16
    qkv = linear(x2, lp["qkv_w"], lp["qkv_b"]).reshape(B, S, 3 * H)       # fused QKV
    q, k, v = qkv[..., :H], qkv[..., H:2 * H], qkv[..., 2 * H:]           # cheap slices
    ctx = mha(q, k, v, key_mask, num_heads=num_heads, causal=causal)      # [B,S,H]
    a = linear_res_ln(ctx.reshape(B * S, H), lp["attn_out_w"], lp["attn_out_b"],
                      x2, lp["attn_ln_g"], lp["attn_ln_b"])               # BertSelfOutput
    i = linear(a, lp["inter_w"], lp["inter_b"], act="gelu")               # BertIntermediate
    o = linear_res_ln(i, lp["out_w"], lp["out_b"],
                      a, lp["out_ln_g"], lp["out_ln_b"])                  # BertOutput
    return o.reshape(B, S, H)


def bert_model_forward(tokens, params, num_heads, causal=False):
    # TODO(synk): task_prompt / use_cache KV-cache / cross-attention (video_feat)
    # / full_masker branches not implemented; default BertModel.forward path only.
    x = bert_embeddings(tokens, params)
    key_mask = (tokens != 0).astype(jnp.float32)[:, None, :]              # [B,1,S]
    for lp in params["layers"]:
        x = bert_layer(x, lp, key_mask, num_heads, causal)
    return x  # sequence_output


def bert_pooler(sequence_output, w, b):
    # Token-0 slice kept in XLA (a (B,1,H) seq-dim block would break (8,128) tiling).
    first = sequence_output[:, 0, :]
    return linear(first, w, b, act="tanh", out_dtype=jnp.float32)


# ----------------------------------------------------------------------------
# Pure-JAX f32 reference (mirrors the PyTorch module math)
# ----------------------------------------------------------------------------
_HI = jax.lax.Precision.HIGHEST


def _ref_ln(x, g, b, eps=1e-12):
    u = x.mean(-1, keepdims=True)
    s = ((x - u) ** 2).mean(-1, keepdims=True)
    return g * ((x - u) / jnp.sqrt(s + eps)) + b


def _ref_gelu(x):
    return x * 0.5 * (1.0 + jax.lax.erf(x / jnp.sqrt(2.0).astype(x.dtype)))


def ref_bert_model(tokens, params, num_heads, causal=False):
    B, S = tokens.shape
    H = params["word_emb"].shape[1]
    d = H // num_heads
    we = params["word_emb"][tokens]
    pb = params["pos_emb"][:S] + params["tok_type_emb"][0][None, :]
    x = _ref_ln(we + pb[None], params["emb_ln_g"], params["emb_ln_b"])
    key = (tokens != 0).astype(jnp.float32)
    mask = jnp.broadcast_to(key[:, None, :], (B, S, S))
    if causal:
        mask = jnp.tril(mask)
    mask = ((1.0 - mask) * -10000.0)[:, None]
    for lp in params["layers"]:
        qkv = jnp.dot(x, lp["qkv_w"].astype(jnp.float32), precision=_HI) + lp["qkv_b"]
        q, k, v = jnp.split(qkv, 3, axis=-1)

        def heads(t):
            return t.reshape(B, S, num_heads, d).transpose(0, 2, 1, 3)

        q, k, v = heads(q), heads(k), heads(v)
        scores = jnp.einsum("bhqd,bhkd->bhqk", q, k, precision=_HI) / math.sqrt(d) + mask
        p = jax.nn.softmax(scores, axis=-1)
        ctx = jnp.einsum("bhqk,bhkd->bhqd", p, v, precision=_HI)
        ctx = ctx.transpose(0, 2, 1, 3).reshape(B, S, H)
        a = _ref_ln(jnp.dot(ctx, lp["attn_out_w"].astype(jnp.float32), precision=_HI)
                    + lp["attn_out_b"] + x, lp["attn_ln_g"], lp["attn_ln_b"])
        i = _ref_gelu(jnp.dot(a, lp["inter_w"].astype(jnp.float32), precision=_HI)
                      + lp["inter_b"])
        x = _ref_ln(jnp.dot(i, lp["out_w"].astype(jnp.float32), precision=_HI)
                    + lp["out_b"] + a, lp["out_ln_g"], lp["out_ln_b"])
    return x


# ----------------------------------------------------------------------------
# params + main
# ----------------------------------------------------------------------------
def make_params(key, *, vocab, hidden, inter, layers, max_pos, type_vocab):
    keys = iter(jax.random.split(key, 256))

    def nrm(shape, scale=0.02):
        return scale * jax.random.normal(next(keys), shape, dtype=jnp.float32)

    def wgt(shape):
        # nn.Linear weights stored pre-transposed [in, out] and pre-cast to bf16.
        return nrm(shape).astype(_MATMUL_DTYPE)

    params = {
        "word_emb": nrm((vocab, hidden)),
        "pos_emb": nrm((max_pos, hidden)),
        "tok_type_emb": nrm((type_vocab, hidden)),
        "emb_ln_g": 1.0 + nrm((hidden,), 0.05),
        "emb_ln_b": nrm((hidden,), 0.05),
        "layers": [],
    }
    for _ in range(layers):
        params["layers"].append({
            "qkv_w": wgt((hidden, 3 * hidden)), "qkv_b": nrm((3 * hidden,)),
            "attn_out_w": wgt((hidden, hidden)), "attn_out_b": nrm((hidden,)),
            "attn_ln_g": 1.0 + nrm((hidden,), 0.05), "attn_ln_b": nrm((hidden,), 0.05),
            "inter_w": wgt((hidden, inter)), "inter_b": nrm((inter,)),
            "out_w": wgt((inter, hidden)), "out_b": nrm((hidden,)),
            "out_ln_g": 1.0 + nrm((hidden,), 0.05), "out_ln_b": nrm((hidden,), 0.05),
        })
    params["pooler_w"] = wgt((hidden, hidden))
    params["pooler_b"] = nrm((hidden,))
    return params


if __name__ == "__main__":
    B, S, H = 2, 8, 32
    NUM_HEADS, INTER, LAYERS = 4, 64, 2
    VOCAB, MAX_POS, TYPE_VOCAB = 50, 16, 2

    root = jax.random.PRNGKey(0)
    k_tok, k_par = jax.random.split(root)
    tokens = jax.random.randint(k_tok, (B, S), 1, VOCAB, dtype=jnp.int32)
    tokens = tokens.at[1, 6:].set(0)  # some padding to exercise the mask
    params = make_params(k_par, vocab=VOCAB, hidden=H, inter=INTER,
                         layers=LAYERS, max_pos=MAX_POS, type_vocab=TYPE_VOCAB)

    seq_out = bert_model_forward(tokens, params, num_heads=NUM_HEADS)
    pooled = bert_pooler(seq_out, params["pooler_w"], params["pooler_b"])
    seq_out, pooled = jax.block_until_ready((seq_out, pooled))

    ref_seq = ref_bert_model(tokens, params, NUM_HEADS)
    ref_pooled = jnp.tanh(
        jnp.dot(ref_seq[:, 0, :], params["pooler_w"].astype(jnp.float32),
                precision=_HI) + params["pooler_b"])

    assert seq_out.shape == (B, S, H)
    assert pooled.shape == (B, H)
    # bf16 matmuls / bf16 activation storage / approx reciprocal -> relaxed tol.
    assert jnp.allclose(seq_out.astype(jnp.float32), ref_seq, atol=3e-2, rtol=3e-2)
    assert jnp.allclose(pooled.astype(jnp.float32), ref_pooled, atol=3e-2, rtol=3e-2)

    print("KERNEL_OK")
</pallas_src>

<mosaic_0001>
module attributes {stable_mosaic.version = 11 : i64} {
  func.func @_emb_ln_kernel(%arg0: i32, %arg1: memref<1x8x32xf32, #tpu.memory_space<vmem>>, %arg2: memref<8x32xf32, #tpu.memory_space<vmem>>, %arg3: memref<1x32xf32, #tpu.memory_space<vmem>>, %arg4: memref<1x32xf32, #tpu.memory_space<vmem>>, %arg5: memref<1x8x32xbf16, #tpu.memory_space<vmem>>) attributes {dimension_semantics = [#tpu.dimension_semantics<parallel>], iteration_bounds = array<i64: 2>, scalar_prefetch = 0 : i64, scratch_operands = 0 : i64, tpu.core_type = #tpu.core_type<tc>, window_params = [{transform_indices = @transform_0, window_bounds = array<i64: 1, 8, 32>}, {pipeline_mode = #tpu.pipeline_mode<synchronous>, transform_indices = @transform_1, window_bounds = array<i64: 8, 32>}, {pipeline_mode = #tpu.pipeline_mode<synchronous>, transform_indices = @transform_2, window_bounds = array<i64: 1, 32>}, {pipeline_mode = #tpu.pipeline_mode<synchronous>, transform_indices = @transform_3, window_bounds = array<i64: 1, 32>}, {transform_indices = @transform_4, window_bounds = array<i64: 1, 8, 32>}]} {
    %c0 = arith.constant 0 : index
    %c0_0 = arith.constant 0 : index
    %c0_1 = arith.constant 0 : index
    %0 = vector.load %arg1[%c0, %c0_0, %c0_1] : memref<1x8x32xf32, #tpu.memory_space<vmem>>, vector<1x8x32xf32>
    %1 = vector.shape_cast %0 : vector<1x8x32xf32> to vector<8x32xf32>
    %c0_2 = arith.constant 0 : index
    %c0_3 = arith.constant 0 : index
    %2 = vector.load %arg2[%c0_2, %c0_3] : memref<8x32xf32, #tpu.memory_space<vmem>>, vector<8x32xf32>
    %3 = arith.addf %1, %2 : vector<8x32xf32>
    %c0_4 = arith.constant 0 : index
    %c0_5 = arith.constant 0 : index
    %4 = vector.load %arg3[%c0_4, %c0_5] : memref<1x32xf32, #tpu.memory_space<vmem>>, vector<1x32xf32>
    %c0_6 = arith.constant 0 : index
    %c0_7 = arith.constant 0 : index
    %5 = vector.load %arg4[%c0_6, %c0_7] : memref<1x32xf32, #tpu.memory_space<vmem>>, vector<1x32xf32>
    %cst = arith.constant dense<0.000000e+00> : vector<8xf32>
    %6 = vector.multi_reduction <add>, %3, %cst [1] : vector<8x32xf32> to vector<8xf32>
    %7 = vector.shape_cast %6 : vector<8xf32> to vector<8x1xf32>
    %cst_8 = arith.constant 3.200000e+01 : f32
    %8 = vector.broadcast %cst_8 : f32 to vector<8x1xf32>
    %9 = arith.divf %7, %8 : vector<8x1xf32>
    %10 = vector.broadcast %9 : vector<8x1xf32> to vector<8x32xf32>
    %11 = arith.subf %3, %10 : vector<8x32xf32>
    %12 = arith.mulf %11, %11 : vector<8x32xf32>
    %cst_9 = arith.constant dense<0.000000e+00> : vector<8xf32>
    %13 = vector.multi_reduction <add>, %12, %cst_9 [1] : vector<8x32xf32> to vector<8xf32>
    %14 = vector.shape_cast %13 : vector<8xf32> to vector<8x1xf32>
    %cst_10 = arith.constant 3.200000e+01 : f32
    %15 = vector.broadcast %cst_10 : f32 to vector<8x1xf32>
    %16 = arith.divf %14, %15 : vector<8x1xf32>
    %cst_11 = arith.constant 9.99999996E-13 : f32
    %17 = vector.broadcast %cst_11 : f32 to vector<8x1xf32>
    %18 = arith.addf %16, %17 : vector<8x1xf32>
    %19 = math.sqrt %18 : vector<8x1xf32>
    %20 = vector.broadcast %19 : vector<8x1xf32> to vector<8x32xf32>
    %21 = arith.divf %11, %20 : vector<8x32xf32>
    %22 = vector.broadcast %4 : vector<1x32xf32> to vector<8x32xf32>
    %23 = arith.mulf %22, %21 : vector<8x32xf32>
    %24 = vector.broadcast %5 : vector<1x32xf32> to vector<8x32xf32>
    %25 = arith.addf %23, %24 : vector<8x32xf32>
    %26 = arith.truncf %25 : vector<8x32xf32> to vector<8x32xbf16>
    %c0_12 = arith.constant 0 : index
    %c0_13 = arith.constant 0 : index
    %c0_14 = arith.constant 0 : index
    %27 = vector.load %arg5[%c0_12, %c0_13, %c0_14] : memref<1x8x32xbf16, #tpu.memory_space<vmem>>, vector<1x8x32xbf16>
    %28 = vector.shape_cast %27 : vector<1x8x32xbf16> to vector<8x32xbf16>
    %29 = vector.shape_cast %26 : vector<8x32xbf16> to vector<1x8x32xbf16>
    tpu.vector_store %arg5[%c0_12, %c0_13, %c0_14], %29 {strides = array<i32>} : memref<1x8x32xbf16, #tpu.memory_space<vmem>>, vector<1x8x32xbf16>,
    return
  }
  func.func @transform_0(%arg0: i32) -> (i32, i32, i32) {
    %c0_i32 = arith.constant 0 : i32
    %c0_i32_0 = arith.constant 0 : i32
    %c0_i32_1 = arith.constant 0 : i32
    return %arg0, %c0_i32, %c0_i32_0 : i32, i32, i32
  }
  func.func @transform_1(%arg0: i32) -> (i32, i32) {
    %c0_i32 = arith.constant 0 : i32
    %c0_i32_0 = arith.constant 0 : i32
    %c0_i32_1 = arith.constant 0 : i32
    return %c0_i32, %c0_i32_0 : i32, i32
  }
  func.func @transform_2(%arg0: i32) -> (i32, i32) {
    %c0_i32 = arith.constant 0 : i32
    %c0_i32_0 = arith.constant 0 : i32
    %c0_i32_1 = arith.constant 0 : i32
    return %c0_i32, %c0_i32_0 : i32, i32
  }
  func.func @transform_3(%arg0: i32) -> (i32, i32) {
    %c0_i32 = arith.constant 0 : i32
    %c0_i32_0 = arith.constant 0 : i32
    %c0_i32_1 = arith.constant 0 : i32
    return %c0_i32, %c0_i32_0 : i32, i32
  }
  func.func @transform_4(%arg0: i32) -> (i32, i32, i32) {
    %c0_i32 = arith.constant 0 : i32
    %c0_i32_0 = arith.constant 0 : i32
    %c0_i32_1 = arith.constant 0 : i32
    return %arg0, %c0_i32, %c0_i32_0 : i32, i32, i32
  }
}

</mosaic_0001>

<llo_original>
// kernel: tpu_custom_call.1
$region0: #{tpu_custom_call.1}
  #allocation0 [shape = 'u32[]', space=smem, size = 0x4, offset = 0x4, fixed_abs, tag = 'smem constant byte address 0x4 - core index']
  #allocation1 [shape = 'u32[144,128]{1,0:T(1,128)}', space=vmem, size = 0x12000, scoped, tag = 'internal scratch']
  %s0 = inlined_call_operand.hbm [shape: f32[2,8,32], index: 0, kind: input, shape index: {}]
  %s1 = inlined_call_operand.hbm [shape: f32[8,32], index: 1, kind: input, shape index: {}]
  %s2 = inlined_call_operand.vmem [shape: f32[1,32], index: 2, kind: input, shape index: {}]
  %s3 = inlined_call_operand.vmem [shape: f32[1,32], index: 3, kind: input, shape index: {}]
  %s4 = inlined_call_operand.hbm [shape: bf16[2,8,32], index: 4, kind: output, shape index: {}]
  %s5 = sld [smem:[#allocation0]]
  $region57: #{tpu_custom_call.1} parent=0
    _
  %s7 = ssub.s32 1, %s5
  %s8 = scalar_select 0, %s7, %s5
  $region1: #{tpu_custom_call.1} parent=0
    #allocation2 [shape = 'u8[8192]{0}', space=vmem, size = 0x2000, scoped, tag = 'input window, operand 0']
    #allocation3 [shape = 's32[2]{0}', space=sflag, size = 0x8, scoped, tag = 'scoped memory for tpu_custom_call.1']
    #allocation4 [shape = 's32[2]{0}', space=sflag, size = 0x8, scoped, tag = 'scoped memory for tpu_custom_call.1']
    #allocation5 [shape = 'u8[4096]{0}', space=vmem, size = 0x1000, scoped, tag = 'input window, operand 1, single buffered']
    #allocation6 [shape = 's32[1]{0}', space=sflag, size = 0x4, scoped, tag = 'scoped memory for tpu_custom_call.1']
    #allocation7 [shape = 'u8[4096]{0}', space=vmem, size = 0x1000, scoped, tag = 'output window, operand 0']
    %9 = vsyncpa [#allocation3], 0
    %s10 = scalar_lea.sflag [#allocation3], 1
    %11 = vsyncpa %s10, 0
    %12 = vsyncpa [#allocation6], 0
    %13 = vsyncpa [#allocation4], 0
    %s14 = scalar_lea.sflag [#allocation4], 1
    %15 = vsyncpa %s14, 0
    loop: start=0, step=1, limit=4
    $region2: #{tpu_custom_call.1} parent=1 // loop_pre_header
      _
    $region3: #{tpu_custom_call.1} parent=1 // loop_header
      %s17 = sphi 0, %s21
      %p18 = scmp.ge.s32.totalorder %s17, 4
      %s27 = sphi 0, %s29
      %s30 = sphi 0, %s27
      %s31 = sphi 0, %s30
      %s47 = sphi 0, %s31
      %s51 = sphi 0, %s51
      %s53 = sphi 0, %s51
      %s54 = sphi 0, %s53
      %s68 = sphi 0, %s54
      %s72 = sphi 0, %s72
      %s74 = sphi 0, %s72
      %s75 = sphi 0, %s74
      %s89 = sphi 0, %s75
      %s93 = sphi 0, %s93
      %s95 = sphi 0, %s93
      %s96 = sphi 0, %s95
      %s110 = sphi 0, %s96
      %s116 = sphi 0, %s118
      %s119 = sphi 0, %s116
      %s120 = sphi 0, %s119
      %s136 = sphi 0, %s120
    $region4: #{tpu_custom_call.1} parent=1 // loop_header_branch
      %20 = sbr.rel (%p18) target = $region8
    $region5: #{tpu_custom_call.1} parent=1 // loop_body
      %s22 = ssub.s32 %s17, 1
      %s23 = ssub.s32 %s17, 2
      %s24 = sadd.s32 %s17, 1
      %s25 = ssub.s32 %s17, %s24
      %p26 = scmp.eq.s32.totalorder %s25, 0
      %s28 = sadd.s32 %s27, 1
      %s29 = scalar_select %p26, %s27, %s28
      %p32 = pneg %p26
      %p33 = scmp.eq.s32.totalorder %s17, 1
      %p34 = por %p32, %p33
      %p35 = scmp.ne.s32.totalorder %s27, %s30
      %p36 = scmp.eq.s32.totalorder %s17, 0
      %p37 = por %p35, %p36
      %p38 = scmp.ne.s32.totalorder %s27, %s30
      %p39 = scmp.eq.s32.totalorder %s22, 1
      %p40 = por %p38, %p39
      %p41 = scmp.ne.s32.totalorder %s30, %s31
      %p42 = scmp.eq.s32.totalorder %s22, 0
      %p43 = por %p41, %p42
      %p44 = scmp.ne.s32.totalorder %s30, %s31
      %p45 = scmp.eq.s32.totalorder %s23, 1
      %p46 = por %p44, %p45
      %p48 = scmp.ne.s32.totalorder %s31, %s47
      %p49 = scmp.eq.s32.totalorder %s23, 0
      %p50 = por %p48, %p49
      %s52 = sadd.s32 %s51, 1
      %p55 = scmp.eq.s32.totalorder %s17, 1
      %p56 = scmp.ne.s32.totalorder %s51, %s53
      %p57 = scmp.eq.s32.totalorder %s17, 0
      %p58 = por %p56, %p57
      %p59 = scmp.ne.s32.totalorder %s51, %s53
      %p60 = scmp.eq.s32.totalorder %s22, 1
      %p61 = por %p59, %p60
      %p62 = scmp.ne.s32.totalorder %s53, %s54
      %p63 = scmp.eq.s32.totalorder %s22, 0
      %p64 = por %p62, %p63
      %p65 = scmp.ne.s32.totalorder %s53, %s54
      %p66 = scmp.eq.s32.totalorder %s23, 1
      %p67 = por %p65, %p66
      %p69 = scmp.ne.s32.totalorder %s54, %s68
      %p70 = scmp.eq.s32.totalorder %s23, 0
      %p71 = por %p69, %p70
      %s73 = sadd.s32 %s72, 1
      %p76 = scmp.eq.s32.totalorder %s17, 1
      %p77 = scmp.ne.s32.totalorder %s72, %s74
      %p78 = scmp.eq.s32.totalorder %s17, 0
      %p79 = por %p77, %p78
      %p80 = scmp.ne.s32.totalorder %s72, %s74
      %p81 = scmp.eq.s32.totalorder %s22, 1
      %p82 = por %p80, %p81
      %p83 = scmp.ne.s32.totalorder %s74, %s75
      %p84 = scmp.eq.s32.totalorder %s22, 0
      %p85 = por %p83, %p84
      %p86 = scmp.ne.s32.totalorder %s74, %s75
      %p87 = scmp.eq.s32.totalorder %s23, 1
      %p88 = por %p86, %p87
      %p90 = scmp.ne.s32.totalorder %s75, %s89
      %p91 = scmp.eq.s32.totalorder %s23, 0
      %p92 = por %p90, %p91
      %s94 = sadd.s32 %s93, 1
      %p97 = scmp.eq.s32.totalorder %s17, 1
      %p98 = scmp.ne.s32.totalorder %s93, %s95
      %p99 = scmp.eq.s32.totalorder %s17, 0
      %p100 = por %p98, %p99
      %p101 = scmp.ne.s32.totalorder %s93, %s95
      %p102 = scmp.eq.s32.totalorder %s22, 1
      %p103 = por %p101, %p102
      %p104 = scmp.ne.s32.totalorder %s95, %s96
      %p105 = scmp.eq.s32.totalorder %s22, 0
      %p106 = por %p104, %p105
      %p107 = scmp.ne.s32.totalorder %s95, %s96
      %p108 = scmp.eq.s32.totalorder %s23, 1
      %p109 = por %p107, %p108
      %p111 = scmp.ne.s32.totalorder %s96, %s110
      %p112 = scmp.eq.s32.totalorder %s23, 0
      %p113 = por %p111, %p112
      %s114 = ssub.s32 %s17, %s24
      %p115 = scmp.eq.s32.totalorder %s114, 0
      %s117 = sadd.s32 %s116, 1
      %s118 = scalar_select %p115, %s116, %s117
      %p121 = pneg %p115
      %p122 = scmp.eq.s32.totalorder %s17, 1
      %p123 = por %p121, %p122
      %p124 = scmp.ne.s32.totalorder %s116, %s119
      %p125 = scmp.eq.s32.totalorder %s17, 0
      %p126 = por %p124, %p125
      %p127 = scmp.ne.s32.totalorder %s116, %s119
      %p128 = scmp.eq.s32.totalorder %s22, 1
      %p129 = por %p127, %p128
      %p130 = scmp.ne.s32.totalorder %s119, %s120
      %p131 = scmp.eq.s32.totalorder %s22, 0
      %p132 = por %p130, %p131
      %p133 = scmp.ne.s32.totalorder %s119, %s120
      %p134 = scmp.eq.s32.totalorder %s23, 1
      %p135 = por %p133, %p134
      %p137 = scmp.ne.s32.totalorder %s120, %s136
      %p138 = scmp.eq.s32.totalorder %s23, 0
      %p139 = por %p137, %p138
      %p140 = scmp.le.s32.totalorder 1, %s17
      %p141 = scmp.lt.s32.totalorder %s17, 3
      %p142 = pnand %p140, %p141
      %p143 = pneg %p142
      // Predicated region
      $region9: #{tpu_custom_call.1} parent=5 // pred_check
        _
      $region10: #{tpu_custom_call.1} parent=5 // pred_check_branch
        %145 = sbr.rel (%p142) target = $region12
      $region11: #{tpu_custom_call.1} parent=5 // pred_region
        %s146 = ssub.s32 %s17, 1
        // Predicated region
        $region13: #{tpu_custom_call.1} parent=11 // pred_check
          %p147 = pneg %p64
        $region14: #{tpu_custom_call.1} parent=11 // pred_check_branch
          %149 = sbr.rel (%p147) target = $region16
        $region15: #{tpu_custom_call.1} parent=11 // pred_region
          %s151 = ssub.s32 128, 128
          %152 = vsyncadd [#allocation6], %s151
          %s154 = sshll.u32 [#allocation5], 4
          %s155 = int_to_ptr.vmem [resolvable:$true] %s154
          %157 = dma.hbm_to_vmem [thread:$0]  %s1, 128, %s155, [#allocation6]
        $region16: #{tpu_custom_call.1} parent=11 // pred_fallthru
          _
        // Predicated region
        $region17: #{tpu_custom_call.1} parent=11 // pred_check
          %p158 = pneg %p85
        $region18: #{tpu_custom_call.1} parent=11 // pred_check_branch
          %160 = sbr.rel (%p158) target = $region20
        $region19: #{tpu_custom_call.1} parent=11 // pred_region
          _
        $region20: #{tpu_custom_call.1} parent=11 // pred_fallthru
          _
        // Predicated region
        $region21: #{tpu_custom_call.1} parent=11 // pred_check
          %p161 = pneg %p106
        $region22: #{tpu_custom_call.1} parent=11 // pred_check_branch
          %163 = sbr.rel (%p161) target = $region24
        $region23: #{tpu_custom_call.1} parent=11 // pred_region
          _
        $region24: #{tpu_custom_call.1} parent=11 // pred_fallthru
          _
      $region12: #{tpu_custom_call.1} parent=5 // pred_fallthru
        _
      %p164 = scmp.lt.s32.totalorder %s17, 2
      // Predicated region
      $region25: #{tpu_custom_call.1} parent=5 // pred_check
        %p165 = pneg %p164
      $region26: #{tpu_custom_call.1} parent=5 // pred_check_branch
        %167 = sbr.rel (%p165) target = $region28
      $region27: #{tpu_custom_call.1} parent=5 // pred_region
        // Predicated region
        $region29: #{tpu_custom_call.1} parent=27 // pred_check
          %p168 = pneg %p37
        $region30: #{tpu_custom_call.1} parent=27 // pred_check_branch
          %170 = sbr.rel (%p168) target = $region32
        $region31: #{tpu_custom_call.1} parent=27 // pred_region
          %s171 = sand.u32 %s27, 1
          %s172 = scalar_lea.sflag [#allocation3], %s171
          %s173 = sand.u32 %s27, 1
          %s174 = smul.addr %s173, 8
          %s175 = scalar_lea.vmem [#allocation2], %s174
          %s177 = ssub.s32 128, 128
          %178 = vsyncadd %s172, %s177
          %s179 = smul.addr %s17, 128
          %s180 = scalar_lea.hbm %s0, %s179
          %s182 = sshll.u32 %s175, 4
          %s183 = int_to_ptr.vmem [resolvable:$true] %s182
          %185 = dma.hbm_to_vmem [thread:$0]  %s180, 128, %s183, %s172
        $region32: #{tpu_custom_call.1} parent=27 // pred_fallthru
          _
      $region28: #{tpu_custom_call.1} parent=5 // pred_fallthru
        _
      %p186 = scmp.le.s32.totalorder 1, %s17
      %p187 = scmp.lt.s32.totalorder %s17, 3
      %p188 = pnand %p186, %p187
      %p189 = pneg %p188
      // Predicated region
      $region33: #{tpu_custom_call.1} parent=5 // pred_check
        _
      $region34: #{tpu_custom_call.1} parent=5 // pred_check_branch
        %191 = sbr.rel (%p188) target = $region36
      $region35: #{tpu_custom_call.1} parent=5 // pred_region
        %s192 = ssub.s32 %s17, 1
        %s193 = sand.u32 %s30, 1
        %s194 = scalar_lea.sflag [#allocation3], %s193
        %s195 = sand.u32 %s30, 1
        %s196 = smul.addr %s195, 8
        %s197 = scalar_lea.vmem [#allocation2], %s196
        // Predicated region
        $region37: #{tpu_custom_call.1} parent=35 // pred_check
          %p198 = pneg %p43
        $region38: #{tpu_custom_call.1} parent=35 // pred_check_branch
          %200 = sbr.rel (%p198) target = $region40
        $region39: #{tpu_custom_call.1} parent=35 // pred_region
          %201 = dma.done %s194, 128
        $region40: #{tpu_custom_call.1} parent=35 // pred_fallthru
          _
        // Predicated region
        $region41: #{tpu_custom_call.1} parent=35 // pred_check
          %p202 = pneg %p64
        $region42: #{tpu_custom_call.1} parent=35 // pred_check_branch
          %204 = sbr.rel (%p202) target = $region44
        $region43: #{tpu_custom_call.1} parent=35 // pred_region
          %205 = dma.done [#allocation6], 128
        $region44: #{tpu_custom_call.1} parent=35 // pred_fallthru
          _
        %s206 = sand.u32 %s30, 1
        %s207 = scalar_lea.sflag [#allocation3], %s206
        %s208 = sand.u32 %s30, 1
        %s209 = smul.addr %s208, 8
        %s210 = scalar_lea.vmem [#allocation2], %s209
        %p211 = pneg %p43
        %p212 = pneg %p40
        %p213 = pneg %p64
        %p214 = pneg %p61
        %p215 = pneg %p85
        %p216 = pneg %p82
        %p217 = pneg %p106
        %p218 = pneg %p103
        %p219 = pneg %p132
        %p220 = pneg %p129
        %s221 = sand.u32 %s119, 1
        %s222 = scalar_lea.sflag [#allocation4], %s221
        %s223 = sand.u32 %s119, 1
        %s224 = smul.addr %s223, 4
        %s225 = scalar_lea.vmem [#allocation7], %s224
        %v226 = vld [vmem:[%s197] sm:$0xff]
        %v227 = vld [vmem:[#allocation5] sm:$0xff]
        %v228 = vadd.f32 %v226, %v227
        %v229 = vld [vmem:[%s2] sm:$0x1]
        %v230 = vld [vmem:[%s3] sm:$0x1]
        %vm231 = vcmask 261120
        %v232 = vsel %vm231, %v228, 0.0
        %233 = vadd.xlane.f32.xlu0 %v232
        %v234 = vpop.xlane.xlu0 %233
        %v235 = vrcp.pop 32.0
        %v236 = vmul.f32 %v234, %v235
        %v237 = vsub.f32 %v228, %v236
        %v238 = vmul.f32 %v237, %v237
        %v239 = vsel %vm231, %v238, 0.0
        %240 = vadd.xlane.f32.xlu0 %v239
        %v241 = vpop.xlane.xlu0 %240
        %v242 = vmul.f32 %v241, %v235
        %v243 = vadd.f32 %v242, 1e-12
        %v244 = vrsqrt.pop %v243
        %v245 = vmul.f32 %v243, %v244
        %vm246 = vcmp.eq.f32.partialorder %v243, inf
        %v247 = vsel %vm246, %v243, %v245
        %vm248 = vcmp.eq.f32.partialorder %v243, 0.0
        %v249 = vand.u32 %v243, 2147483648
        %v250 = vsel %vm248, %v249, %v247
        %v251 = vrcp.pop %v250
        %v252 = vmul.f32 %v237, %v251
        %v254 = vlaneseq
        %v255 = vshrl.u32 %v254, 7
        %v256 = vsub.s32 0, %v255
        %v257 = vrot.slane %v229, %v256
        %v259 = vmul.f32 %v257, %v252
        %v261 = vlaneseq
        %v262 = vshrl.u32 %v261, 7
        %v263 = vsub.s32 0, %v262
        %v264 = vrot.slane %v230, %v263
        %v266 = vadd.f32 %v259, %v264
        %v267 = vpack.c.bf16 %v266, %v266
        %vm268 = vcmask 257024
        %269 = vst.msk [vmem:[%s225] sm:$0xf] %vm268, %v267
        %s270 = sand.u32 %s119, 1
        %s271 = scalar_lea.sflag [#allocation4], %s270
        %s272 = sand.u32 %s119, 1
        %s273 = smul.addr %s272, 4
        %s274 = scalar_lea.vmem [#allocation7], %s273
        // Predicated region
        $region45: #{tpu_custom_call.1} parent=35 // pred_check
          %p275 = pneg %p129
        $region46: #{tpu_custom_call.1} parent=35 // pred_check_branch
          %277 = sbr.rel (%p275) target = $region48
        $region47: #{tpu_custom_call.1} parent=35 // pred_region
          %s279 = ssub.s32 64, 64
          %280 = vsyncadd %s271, %s279
          %s281 = smul.addr %s22, 64
          %s282 = scalar_lea.hbm %s4, %s281
          %s284 = sshll.u32 %s274, 4
          %s285 = int_to_ptr.vmem [resolvable:$true] %s284
          %287 = dma.vmem_to_hbm [thread:$0]  %s285, 64, %s282, %s271
        $region48: #{tpu_custom_call.1} parent=35 // pred_fallthru
          _
      $region36: #{tpu_custom_call.1} parent=5 // pred_fallthru
        _
      %p288 = scmp.le.s32.totalorder 2, %s17
      // Predicated region
      $region49: #{tpu_custom_call.1} parent=5 // pred_check
        %p289 = pneg %p288
      $region50: #{tpu_custom_call.1} parent=5 // pred_check_branch
        %291 = sbr.rel (%p289) target = $region52
      $region51: #{tpu_custom_call.1} parent=5 // pred_region
        %s292 = ssub.s32 %s17, 2
        // Predicated region
        $region53: #{tpu_custom_call.1} parent=51 // pred_check
          %p293 = pneg %p135
        $region54: #{tpu_custom_call.1} parent=51 // pred_check_branch
          %295 = sbr.rel (%p293) target = $region56
        $region55: #{tpu_custom_call.1} parent=51 // pred_region
          %s296 = sand.u32 %s120, 1
          %s297 = scalar_lea.sflag [#allocation4], %s296
          %s298 = sand.u32 %s120, 1
          %s299 = smul.addr %s298, 4
          %s300 = scalar_lea.vmem [#allocation7], %s299
          %301 = dma.done %s297, 64
        $region56: #{tpu_custom_call.1} parent=51 // pred_fallthru
          _
      $region52: #{tpu_custom_call.1} parent=5 // pred_fallthru
        _
    $region6: #{tpu_custom_call.1} parent=1 // loop_footer
      %s21 = sadd.s32 1, %s17
    $region7: #{tpu_custom_call.1} parent=1 // loop_footer_branch
      %16 = sbr.rel target = $region3
    $region8: #{tpu_custom_call.1} parent=1 // loop_exit
      _
    %302 = vsyncpa [#allocation3], 1
    %s303 = scalar_lea.sflag [#allocation3], 1
    %304 = vsyncpa %s303, 1
    %305 = vsyncpa [#allocation6], 1
    %306 = vsyncpa [#allocation4], 1
    %s307 = scalar_lea.sflag [#allocation4], 1
    %308 = vsyncpa %s307, 1

</llo_original>
